<compile_context>
chip_gen: v6e
topology: v6e:2x2x1
jax: 0.10.0
libtpu: 0.0.40
codegen_flags: <defaults>
</compile_context>

<pallas_src>
import functools

import jax
import jax.numpy as jnp
from jax.experimental import pallas as pl
from jax.experimental.pallas import tpu as pltpu

BN_EPS = 1e-5


def _apply_act(name, x):
    if name is None or name in ("none", "None", "NONE"):
        return x
    if name == "relu":
        return jnp.maximum(x, 0.0)
    if name == "lrelu":
        return jnp.where(x > 0, x, 0.01 * x)
    if name == "sigmoid":
        return jax.nn.sigmoid(x)
    if name == "tanh":
        return jnp.tanh(x)
    if name == "silu":
        return x * jax.nn.sigmoid(x)
    # TODO(synk): prelu / selu activations not implemented; default to ReLU like the module.
    return jnp.maximum(x, 0.0)


# ---------------- Pallas kernels ----------------

def _linear_bn_stats_kernel(n_valid, eps, xT_ref, w_ref, b_ref, g_ref, be_ref,
                            y_ref, scale_ref, shift_ref):
    """Phase 0: per batch tile compute y = W @ xT + b (lane-dense, batch on lanes),
    write it out, and accumulate per-feature sum / sum-of-squares in the resident
    (H,1) output blocks.  The last tile folds them into BN scale/shift."""
    t = pl.program_id(0)
    tile_b = y_ref.shape[1]

    y = jnp.dot(w_ref[...], xT_ref[...], preferred_element_type=jnp.float32)
    y = y + b_ref[...]
    y_ref[...] = y

    # Mask padded batch columns out of the statistics.
    col = jax.lax.broadcasted_iota(jnp.int32, y.shape, 1) + t * tile_b
    ym = jnp.where(col < n_valid, y, 0.0)
    part_sum = jnp.sum(ym, axis=1, keepdims=True)
    part_sq = jnp.sum(ym * ym, axis=1, keepdims=True)

    @pl.when(t == 0)
    def _():
        scale_ref[...] = jnp.zeros_like(scale_ref)
        shift_ref[...] = jnp.zeros_like(shift_ref)

    scale_ref[...] += part_sum
    shift_ref[...] += part_sq

    @pl.when(t == pl.num_programs(0) - 1)
    def _():
        inv_n = 1.0 / n_valid
        mean = scale_ref[...] * inv_n
        var = shift_ref[...] * inv_n - mean * mean        # biased variance (PyTorch BN)
        sc = g_ref[...] * jax.lax.rsqrt(var + eps)        # rsqrt + gamma folded once
        scale_ref[...] = sc
        shift_ref[...] = be_ref[...] - mean * sc


def _bn_act_kernel(act, y_ref, scale_ref, shift_ref, o_ref):
    """Phase 1: normalize (single FMA per element) + activation."""
    o_ref[...] = _apply_act(act, y_ref[...] * scale_ref[...] + shift_ref[...])


def _linear_act_kernel(act, xT_ref, w_ref, b_ref, o_ref):
    """Layer without BatchNorm: fused matmul + bias + activation."""
    y = jnp.dot(w_ref[...], xT_ref[...], preferred_element_type=jnp.float32)
    o_ref[...] = _apply_act(act, y + b_ref[...])


# ---------------- wrappers ----------------

def _dense_layer_T(xT, W, b, gamma, beta, *, act, batch_norm, n_valid, tile_b):
    """One CustomDense layer in transposed (features x batch) layout.
    xT: (D, Bp) with Bp a multiple of tile_b.  Returns (H, Bp)."""
    D, Bp = xT.shape
    H = W.shape[0]
    num_tiles = Bp // tile_b
    b2 = b.reshape(H, 1).astype(jnp.float32)

    if not batch_norm:
        return pl.pallas_call(
            functools.partial(_linear_act_kernel, act),
            out_shape=jax.ShapeDtypeStruct((H, Bp), jnp.float32),
            grid=(num_tiles,),
            in_specs=[
                pl.BlockSpec((D, tile_b), lambda t: (0, t)),
                pl.BlockSpec((H, D), lambda t: (0, 0)),
                pl.BlockSpec((H, 1), lambda t: (0, 0)),
            ],
            out_specs=pl.BlockSpec((H, tile_b), lambda t: (0, t)),
            compiler_params=pltpu.CompilerParams(
                dimension_semantics=("parallel",)),
        )(xT, W, b2)

    g2 = gamma.reshape(H, 1).astype(jnp.float32)
    be2 = beta.reshape(H, 1).astype(jnp.float32)

    # Phase 0: matmul + bias + cross-tile BN statistics (accumulator outputs).
    y, scale, shift = pl.pallas_call(
        functools.partial(_linear_bn_stats_kernel, n_valid, BN_EPS),
        out_shape=(
            jax.ShapeDtypeStruct((H, Bp), jnp.float32),
            jax.ShapeDtypeStruct((H, 1), jnp.float32),
            jax.ShapeDtypeStruct((H, 1), jnp.float32),
        ),
        grid=(num_tiles,),
        in_specs=[
            pl.BlockSpec((D, tile_b), lambda t: (0, t)),
            pl.BlockSpec((H, D), lambda t: (0, 0)),
            pl.BlockSpec((H, 1), lambda t: (0, 0)),
            pl.BlockSpec((H, 1), lambda t: (0, 0)),
            pl.BlockSpec((H, 1), lambda t: (0, 0)),
        ],
        out_specs=(
            pl.BlockSpec((H, tile_b), lambda t: (0, t)),
            pl.BlockSpec((H, 1), lambda t: (0, 0)),
            pl.BlockSpec((H, 1), lambda t: (0, 0)),
        ),
        compiler_params=pltpu.CompilerParams(
            dimension_semantics=("arbitrary",)),
    )(xT, W, b2, g2, be2)

    # Phase 1: normalize + activation, row-tile parallel.
    return pl.pallas_call(
        functools.partial(_bn_act_kernel, act),
        out_shape=jax.ShapeDtypeStruct((H, Bp), jnp.float32),
        grid=(num_tiles,),
        in_specs=[
            pl.BlockSpec((H, tile_b), lambda t: (0, t)),
            pl.BlockSpec((H, 1), lambda t: (0, 0)),
            pl.BlockSpec((H, 1), lambda t: (0, 0)),
        ],
        out_specs=pl.BlockSpec((H, tile_b), lambda t: (0, t)),
        compiler_params=pltpu.CompilerParams(
            dimension_semantics=("parallel",)),
    )(y, scale, shift)


def layer_dims_encode(input_size, coder_layer_sizes, code_layer):
    """Mirror CustomCoder(encode=True) layer construction."""
    dims = [(input_size, coder_layer_sizes[0])]
    for i in range(len(coder_layer_sizes) - 2):
        dims.append((coder_layer_sizes[i], coder_layer_sizes[i + 1]))
    if code_layer:
        dims.append((coder_layer_sizes[-2], coder_layer_sizes[-1]))
    return dims
    # TODO(synk): encode=False (decoder) layer construction not implemented.


def custom_coder_forward(x, params, acts, bns, *, tile_b=512):
    """x: (B, input_size) f32.  params: list of (W(H,D), b(H,), gamma(H,), beta(H,))."""
    B = x.shape[0]
    Bp = pl.cdiv(B, tile_b) * tile_b
    # One boundary transpose into lane-dense (features x batch) layout.
    h = jnp.pad(x.astype(jnp.float32), ((0, Bp - B), (0, 0))).T       # (D, Bp)
    for (W, b, gamma, beta), act, bn in zip(params, acts, bns):
        h = _dense_layer_T(h, W, b, gamma, beta, act=act, batch_norm=bn,
                           n_valid=B, tile_b=tile_b)
        # Dropout(p=0.0) is identity.
        # TODO(synk): dropout p > 0 (training-mode RNG mask) not implemented.
    return h[:, :B].T                                                  # back to (B, H_last)


def reference_forward(x, params, acts, bns):
    """Pure-JAX reference matching the PyTorch module semantics."""
    h = x
    for (W, b, g, be), act, bn in zip(params, acts, bns):
        h = h @ W.T + b
        if bn:
            mean = jnp.mean(h, axis=0, keepdims=True)
            var = jnp.mean((h - mean) ** 2, axis=0, keepdims=True)     # biased
            h = (h - mean) * jax.lax.rsqrt(var + BN_EPS) * g + be
        h = _apply_act(act, h)
    return h


if __name__ == "__main__":
    # CustomCoder(input_size=32, coder_layer_sizes=[32, 16, 8], code_layer=True,
    #             act_fun_list=['relu'], batchnorm_list=[True]*3,
    #             dropout_list=[0.0]*3, encode=True)
    input_size = 32
    coder_layer_sizes = [32, 16, 8]
    code_layer = True
    num_layers = 3
    acts = ["relu"] * num_layers
    bns = [True] * num_layers
    batch = 200          # not a multiple of 128 -> exercises padded-column masking
    tile_b = 128         # 2 batch tiles -> exercises cross-tile BN accumulation

    dims = layer_dims_encode(input_size, coder_layer_sizes, code_layer)

    key = jax.random.PRNGKey(0)
    params = []
    for (d_in, d_out) in dims:
        key, kw = jax.random.split(key)
        # kaiming_normal_-like scale; Linear bias init to 0.0 (init_module_weights).
        W = jax.random.normal(kw, (d_out, d_in), jnp.float32) * (2.0 / d_in) ** 0.5
        b = jnp.zeros((d_out,), jnp.float32)
        gamma = jnp.ones((d_out,), jnp.float32)    # BatchNorm1d default affine weight
        beta = jnp.zeros((d_out,), jnp.float32)    # BatchNorm1d default affine bias
        params.append((W, b, gamma, beta))

    key, kx = jax.random.split(key)
    x = jax.random.normal(kx, (batch, input_size), jnp.float32)

    out = custom_coder_forward(x, params, acts, bns, tile_b=tile_b)
    jax.block_until_ready(out)
    assert out.shape == (batch, dims[-1][1])

    ref = reference_forward(x, params, acts, bns)
    err = float(jnp.max(jnp.abs(out - ref)))
    assert err < 5e-2, f"max abs error vs reference too large: {err}"

    print("KERNEL_OK")
</pallas_src>

<mosaic_0001>
module attributes {stable_mosaic.version = 11 : i64} {
  func.func @_linear_bn_stats_kernel(%arg0: i32, %arg1: memref<32x128xf32, #tpu.memory_space<vmem>>, %arg2: memref<32x32xf32, #tpu.memory_space<vmem>>, %arg3: memref<32x1xf32, #tpu.memory_space<vmem>>, %arg4: memref<32x1xf32, #tpu.memory_space<vmem>>, %arg5: memref<32x1xf32, #tpu.memory_space<vmem>>, %arg6: memref<32x128xf32, #tpu.memory_space<vmem>>, %arg7: memref<32x1xf32, #tpu.memory_space<vmem>>, %arg8: memref<32x1xf32, #tpu.memory_space<vmem>>) attributes {dimension_semantics = [#tpu.dimension_semantics<arbitrary>], iteration_bounds = array<i64: 2>, scalar_prefetch = 0 : i64, scratch_operands = 0 : i64, tpu.core_type = #tpu.core_type<tc>, window_params = [{transform_indices = @transform_0, window_bounds = array<i64: 32, 128>}, {pipeline_mode = #tpu.pipeline_mode<synchronous>, transform_indices = @transform_1, window_bounds = array<i64: 32, 32>}, {pipeline_mode = #tpu.pipeline_mode<synchronous>, transform_indices = @transform_2, window_bounds = array<i64: 32, 1>}, {pipeline_mode = #tpu.pipeline_mode<synchronous>, transform_indices = @transform_3, window_bounds = array<i64: 32, 1>}, {pipeline_mode = #tpu.pipeline_mode<synchronous>, transform_indices = @transform_4, window_bounds = array<i64: 32, 1>}, {transform_indices = @transform_5, window_bounds = array<i64: 32, 128>}, {pipeline_mode = #tpu.pipeline_mode<synchronous>, transform_indices = @transform_6, window_bounds = array<i64: 32, 1>}, {pipeline_mode = #tpu.pipeline_mode<synchronous>, transform_indices = @transform_7, window_bounds = array<i64: 32, 1>}]} {
    %c0 = arith.constant 0 : index
    %c0_0 = arith.constant 0 : index
    %0 = vector.load %arg2[%c0, %c0_0] : memref<32x32xf32, #tpu.memory_space<vmem>>, vector<32x32xf32>
    %c0_1 = arith.constant 0 : index
    %c0_2 = arith.constant 0 : index
    %1 = vector.load %arg1[%c0_1, %c0_2] : memref<32x128xf32, #tpu.memory_space<vmem>>, vector<32x128xf32>
    %cst = arith.constant dense<0.000000e+00> : vector<32x128xf32>
    %2 = tpu.matmul %0, %1, %cst {dimension_numbers = #tpu.dot_dimension_numbers<[1], [0], [0], [1], [0, 0, 1, 1], [], []>} : vector<32x32xf32>, vector<32x128xf32>, vector<32x128xf32> -> vector<32x128xf32>
    %c0_3 = arith.constant 0 : index
    %c0_4 = arith.constant 0 : index
    %3 = vector.load %arg3[%c0_3, %c0_4] : memref<32x1xf32, #tpu.memory_space<vmem>>, vector<32x1xf32>
    %4 = vector.broadcast %3 : vector<32x1xf32> to vector<32x128xf32>
    %5 = arith.addf %2, %4 : vector<32x128xf32>
    %c0_5 = arith.constant 0 : index
    %c0_6 = arith.constant 0 : index
    %6 = vector.load %arg6[%c0_5, %c0_6] : memref<32x128xf32, #tpu.memory_space<vmem>>, vector<32x128xf32>
    tpu.vector_store %arg6[%c0_5, %c0_6], %5 {strides = array<i32>} : memref<32x128xf32, #tpu.memory_space<vmem>>, vector<32x128xf32>,
    %7 = tpu.iota {dimensions = array<i32: 1>} : vector<32x128xi32>
    %c128_i32 = arith.constant 128 : i32
    %8 = arith.muli %arg0, %c128_i32 : i32
    %9 = vector.broadcast %8 : i32 to vector<32x128xi32>
    %10 = arith.addi %7, %9 : vector<32x128xi32>
    %c200_i32 = arith.constant 200 : i32
    %11 = vector.broadcast %c200_i32 : i32 to vector<32x128xi32>
    %12 = arith.cmpi slt, %10, %11 : vector<32x128xi32>
    %cst_7 = arith.constant 0.000000e+00 : f32
    %13 = vector.broadcast %cst_7 : f32 to vector<32x128xf32>
    %14 = arith.select %12, %5, %13 : vector<32x128xi1>, vector<32x128xf32>
    %cst_8 = arith.constant dense<0.000000e+00> : vector<32xf32>
    %15 = vector.multi_reduction <add>, %14, %cst_8 [1] : vector<32x128xf32> to vector<32xf32>
    %16 = vector.shape_cast %15 : vector<32xf32> to vector<32x1xf32>
    %17 = arith.mulf %14, %14 : vector<32x128xf32>
    %cst_9 = arith.constant dense<0.000000e+00> : vector<32xf32>
    %18 = vector.multi_reduction <add>, %17, %cst_9 [1] : vector<32x128xf32> to vector<32xf32>
    %19 = vector.shape_cast %18 : vector<32xf32> to vector<32x1xf32>
    %c0_i32 = arith.constant 0 : i32
    %20 = arith.cmpi eq, %arg0, %c0_i32 : i32
    %21 = arith.extui %20 : i1 to i32
    %c0_i32_10 = arith.constant 0 : i32
    %22 = arith.cmpi ne, %21, %c0_i32_10 : i32
    scf.if %22 {
      %cst_20 = arith.constant 0.000000e+00 : f32
      %32 = vector.broadcast %cst_20 : f32 to vector<32x1xf32>
      %c0_21 = arith.constant 0 : index
      %c0_22 = arith.constant 0 : index
      %33 = vector.load %arg7[%c0_21, %c0_22] : memref<32x1xf32, #tpu.memory_space<vmem>>, vector<32x1xf32>
      tpu.vector_store %arg7[%c0_21, %c0_22], %32 {strides = array<i32>} : memref<32x1xf32, #tpu.memory_space<vmem>>, vector<32x1xf32>,
      %cst_23 = arith.constant 0.000000e+00 : f32
      %34 = vector.broadcast %cst_23 : f32 to vector<32x1xf32>
      %c0_24 = arith.constant 0 : index
      %c0_25 = arith.constant 0 : index
      %35 = vector.load %arg8[%c0_24, %c0_25] : memref<32x1xf32, #tpu.memory_space<vmem>>, vector<32x1xf32>
      tpu.vector_store %arg8[%c0_24, %c0_25], %34 {strides = array<i32>} : memref<32x1xf32, #tpu.memory_space<vmem>>, vector<32x1xf32>,
    } else {
    }
    %c0_11 = arith.constant 0 : index
    %c0_12 = arith.constant 0 : index
    %23 = vector.load %arg7[%c0_11, %c0_12] : memref<32x1xf32, #tpu.memory_space<vmem>>, vector<32x1xf32>
    %24 = arith.addf %23, %16 : vector<32x1xf32>
    %c0_13 = arith.constant 0 : index
    %c0_14 = arith.constant 0 : index
    %25 = vector.load %arg7[%c0_13, %c0_14] : memref<32x1xf32, #tpu.memory_space<vmem>>, vector<32x1xf32>
    tpu.vector_store %arg7[%c0_13, %c0_14], %24 {strides = array<i32>} : memref<32x1xf32, #tpu.memory_space<vmem>>, vector<32x1xf32>,
    %c0_15 = arith.constant 0 : index
    %c0_16 = arith.constant 0 : index
    %26 = vector.load %arg8[%c0_15, %c0_16] : memref<32x1xf32, #tpu.memory_space<vmem>>, vector<32x1xf32>
    %27 = arith.addf %26, %19 : vector<32x1xf32>
    %c0_17 = arith.constant 0 : index
    %c0_18 = arith.constant 0 : index
    %28 = vector.load %arg8[%c0_17, %c0_18] : memref<32x1xf32, #tpu.memory_space<vmem>>, vector<32x1xf32>
    tpu.vector_store %arg8[%c0_17, %c0_18], %27 {strides = array<i32>} : memref<32x1xf32, #tpu.memory_space<vmem>>, vector<32x1xf32>,
    %c1_i32 = arith.constant 1 : i32
    %29 = arith.cmpi eq, %arg0, %c1_i32 : i32
    %30 = arith.extui %29 : i1 to i32
    %c0_i32_19 = arith.constant 0 : i32
    %31 = arith.cmpi ne, %30, %c0_i32_19 : i32
    scf.if %31 {
      %c0_20 = arith.constant 0 : index
      %c0_21 = arith.constant 0 : index
      %32 = vector.load %arg7[%c0_20, %c0_21] : memref<32x1xf32, #tpu.memory_space<vmem>>, vector<32x1xf32>
      %cst_22 = arith.constant 5.000000e-03 : f32
      %33 = vector.broadcast %cst_22 : f32 to vector<32x1xf32>
      %34 = arith.mulf %32, %33 : vector<32x1xf32>
      %c0_23 = arith.constant 0 : index
      %c0_24 = arith.constant 0 : index
      %35 = vector.load %arg8[%c0_23, %c0_24] : memref<32x1xf32, #tpu.memory_space<vmem>>, vector<32x1xf32>
      %cst_25 = arith.constant 5.000000e-03 : f32
      %36 = vector.broadcast %cst_25 : f32 to vector<32x1xf32>
      %37 = arith.mulf %35, %36 : vector<32x1xf32>
      %38 = arith.mulf %34, %34 : vector<32x1xf32>
      %39 = arith.subf %37, %38 : vector<32x1xf32>
      %c0_26 = arith.constant 0 : index
      %c0_27 = arith.constant 0 : index
      %40 = vector.load %arg4[%c0_26, %c0_27] : memref<32x1xf32, #tpu.memory_space<vmem>>, vector<32x1xf32>
      %cst_28 = arith.constant 9.99999974E-6 : f32
      %41 = vector.broadcast %cst_28 : f32 to vector<32x1xf32>
      %42 = arith.addf %39, %41 : vector<32x1xf32>
      %43 = math.rsqrt %42 : vector<32x1xf32>
      %44 = arith.mulf %40, %43 : vector<32x1xf32>
      %c0_29 = arith.constant 0 : index
      %c0_30 = arith.constant 0 : index
      %45 = vector.load %arg7[%c0_29, %c0_30] : memref<32x1xf32, #tpu.memory_space<vmem>>, vector<32x1xf32>
      tpu.vector_store %arg7[%c0_29, %c0_30], %44 {strides = array<i32>} : memref<32x1xf32, #tpu.memory_space<vmem>>, vector<32x1xf32>,
      %c0_31 = arith.constant 0 : index
      %c0_32 = arith.constant 0 : index
      %46 = vector.load %arg5[%c0_31, %c0_32] : memref<32x1xf32, #tpu.memory_space<vmem>>, vector<32x1xf32>
      %47 = arith.mulf %34, %44 : vector<32x1xf32>
      %48 = arith.subf %46, %47 : vector<32x1xf32>
      %c0_33 = arith.constant 0 : index
      %c0_34 = arith.constant 0 : index
      %49 = vector.load %arg8[%c0_33, %c0_34] : memref<32x1xf32, #tpu.memory_space<vmem>>, vector<32x1xf32>
      tpu.vector_store %arg8[%c0_33, %c0_34], %48 {strides = array<i32>} : memref<32x1xf32, #tpu.memory_space<vmem>>, vector<32x1xf32>,
    } else {
    }
    return
  }
  func.func @transform_0(%arg0: i32) -> (i32, i32) {
    %c0_i32 = arith.constant 0 : i32
    %c0_i32_0 = arith.constant 0 : i32
    return %c0_i32, %arg0 : i32, i32
  }
  func.func @transform_1(%arg0: i32) -> (i32, i32) {
    %c0_i32 = arith.constant 0 : i32
    %c0_i32_0 = arith.constant 0 : i32
    %c0_i32_1 = arith.constant 0 : i32
    return %c0_i32, %c0_i32_0 : i32, i32
  }
  func.func @transform_2(%arg0: i32) -> (i32, i32) {
    %c0_i32 = arith.constant 0 : i32
    %c0_i32_0 = arith.constant 0 : i32
    %c0_i32_1 = arith.constant 0 : i32
    return %c0_i32, %c0_i32_0 : i32, i32
  }
  func.func @transform_3(%arg0: i32) -> (i32, i32) {
    %c0_i32 = arith.constant 0 : i32
    %c0_i32_0 = arith.constant 0 : i32
    %c0_i32_1 = arith.constant 0 : i32
    return %c0_i32, %c0_i32_0 : i32, i32
  }
  func.func @transform_4(%arg0: i32) -> (i32, i32) {
    %c0_i32 = arith.constant 0 : i32
    %c0_i32_0 = arith.constant 0 : i32
    %c0_i32_1 = arith.constant 0 : i32
    return %c0_i32, %c0_i32_0 : i32, i32
  }
  func.func @transform_5(%arg0: i32) -> (i32, i32) {
    %c0_i32 = arith.constant 0 : i32
    %c0_i32_0 = arith.constant 0 : i32
    return %c0_i32, %arg0 : i32, i32
  }
  func.func @transform_6(%arg0: i32) -> (i32, i32) {
    %c0_i32 = arith.constant 0 : i32
    %c0_i32_0 = arith.constant 0 : i32
    %c0_i32_1 = arith.constant 0 : i32
    return %c0_i32, %c0_i32_0 : i32, i32
  }
  func.func @transform_7(%arg0: i32) -> (i32, i32) {
    %c0_i32 = arith.constant 0 : i32
    %c0_i32_0 = arith.constant 0 : i32
    %c0_i32_1 = arith.constant 0 : i32
    return %c0_i32, %c0_i32_0 : i32, i32
  }
}

</mosaic_0001>

<llo_original>
// kernel: tpu_custom_call.1
$region0: #{tpu_custom_call.1}
  #allocation0 [shape = 'u32[]', space=smem, size = 0x4, offset = 0x4, fixed_abs, tag = 'smem constant byte address 0x4 - core index']
  #allocation1 [shape = 'u32[144,128]{1,0:T(1,128)}', space=vmem, size = 0x12000, scoped, tag = 'internal scratch']
  %s0 = inlined_call_operand.vmem [shape: f32[32,256], index: 0, kind: input, shape index: {}]
  %s1 = inlined_call_operand.vmem [shape: f32[32,32], index: 1, kind: input, shape index: {}]
  %s2 = inlined_call_operand.vmem [shape: f32[32,1], index: 2, kind: input, shape index: {}]
  %s3 = inlined_call_operand.vmem [shape: f32[32,1], index: 3, kind: input, shape index: {}]
  %s4 = inlined_call_operand.vmem [shape: f32[32,1], index: 4, kind: input, shape index: {}]
  %s5 = inlined_call_operand.hbm [shape: f32[32,256], index: 5, kind: output, shape index: {0}]
  %s6 = inlined_call_operand.vmem [shape: f32[32,1], index: 6, kind: output, shape index: {1}]
  %s7 = inlined_call_operand.vmem [shape: f32[32,1], index: 7, kind: output, shape index: {2}]
  %8 = xla_tuple %s5, %s6, %s7
  %s9 = sld [smem:[#allocation0]]
  $region115: #{tpu_custom_call.1} parent=0
    _
  %s11 = ssub.s32 1, %s9
  %s12 = scalar_select 0, %s11, %s9
  $region1: #{tpu_custom_call.1} parent=0
    #allocation2 [shape = 'u8[32768]{0}', space=vmem, size = 0x8000, scoped, tag = 'input window, operand 0']
    #allocation3 [shape = 'u8[32768]{0}', space=vmem, size = 0x8000, scoped, tag = 'output window, operand 0']
    #allocation4 [shape = 's32[2]{0}', space=sflag, size = 0x8, scoped, tag = 'scoped memory for tpu_custom_call.1']
    %13 = vsyncpa [#allocation4], 0
    %s14 = scalar_lea.sflag [#allocation4], 1
    %15 = vsyncpa %s14, 0
    loop: start=0, step=1, limit=4
    $region2: #{tpu_custom_call.1} parent=1 // loop_pre_header
      _
    $region3: #{tpu_custom_call.1} parent=1 // loop_header
      %s17 = sphi 0, %s21
      %p18 = scmp.ge.s32.totalorder %s17, 4
      %s27 = sphi 0, %s29
      %s30 = sphi 0, %s27
      %s31 = sphi 0, %s30
      %s47 = sphi 0, %s31
      %s51 = sphi 0, %s51
      %s53 = sphi 0, %s51
      %s54 = sphi 0, %s53
      %s68 = sphi 0, %s54
      %s72 = sphi 0, %s72
      %s74 = sphi 0, %s72
      %s75 = sphi 0, %s74
      %s89 = sphi 0, %s75
      %s93 = sphi 0, %s93
      %s95 = sphi 0, %s93
      %s96 = sphi 0, %s95
      %s110 = sphi 0, %s96
      %s114 = sphi 0, %s114
      %s116 = sphi 0, %s114
      %s117 = sphi 0, %s116
      %s131 = sphi 0, %s117
      %s137 = sphi 0, %s139
      %s140 = sphi 0, %s137
      %s141 = sphi 0, %s140
      %s157 = sphi 0, %s141
      %s161 = sphi 0, %s161
      %s163 = sphi 0, %s161
      %s164 = sphi 0, %s163
      %s178 = sphi 0, %s164
      %s182 = sphi 0, %s182
      %s184 = sphi 0, %s182
      %s185 = sphi 0, %s184
      %s199 = sphi 0, %s185
    $region4: #{tpu_custom_call.1} parent=1 // loop_header_branch
      %20 = sbr.rel (%p18) target = $region8
    $region5: #{tpu_custom_call.1} parent=1 // loop_body
      %s22 = ssub.s32 %s17, 1
      %s23 = ssub.s32 %s17, 2
      %s24 = sadd.s32 %s17, 1
      %s25 = ssub.s32 %s17, %s24
      %p26 = scmp.eq.s32.totalorder %s25, 0
      %s28 = sadd.s32 %s27, 1
      %s29 = scalar_select %p26, %s27, %s28
      %p32 = pneg %p26
      %p33 = scmp.eq.s32.totalorder %s17, 1
      %p34 = por %p32, %p33
      %p35 = scmp.ne.s32.totalorder %s27, %s30
      %p36 = scmp.eq.s32.totalorder %s17, 0
      %p37 = por %p35, %p36
      %p38 = scmp.ne.s32.totalorder %s27, %s30
      %p39 = scmp.eq.s32.totalorder %s22, 1
      %p40 = por %p38, %p39
      %p41 = scmp.ne.s32.totalorder %s30, %s31
      %p42 = scmp.eq.s32.totalorder %s22, 0
      %p43 = por %p41, %p42
      %p44 = scmp.ne.s32.totalorder %s30, %s31
      %p45 = scmp.eq.s32.totalorder %s23, 1
      %p46 = por %p44, %p45
      %p48 = scmp.ne.s32.totalorder %s31, %s47
      %p49 = scmp.eq.s32.totalorder %s23, 0
      %p50 = por %p48, %p49
      %s52 = sadd.s32 %s51, 1
      %p55 = scmp.eq.s32.totalorder %s17, 1
      %p56 = scmp.ne.s32.totalorder %s51, %s53
      %p57 = scmp.eq.s32.totalorder %s17, 0
      %p58 = por %p56, %p57
      %p59 = scmp.ne.s32.totalorder %s51, %s53
      %p60 = scmp.eq.s32.totalorder %s22, 1
      %p61 = por %p59, %p60
      %p62 = scmp.ne.s32.totalorder %s53, %s54
      %p63 = scmp.eq.s32.totalorder %s22, 0
      %p64 = por %p62, %p63
      %p65 = scmp.ne.s32.totalorder %s53, %s54
      %p66 = scmp.eq.s32.totalorder %s23, 1
      %p67 = por %p65, %p66
      %p69 = scmp.ne.s32.totalorder %s54, %s68
      %p70 = scmp.eq.s32.totalorder %s23, 0
      %p71 = por %p69, %p70
      %s73 = sadd.s32 %s72, 1
      %p76 = scmp.eq.s32.totalorder %s17, 1
      %p77 = scmp.ne.s32.totalorder %s72, %s74
      %p78 = scmp.eq.s32.totalorder %s17, 0
      %p79 = por %p77, %p78
      %p80 = scmp.ne.s32.totalorder %s72, %s74
      %p81 = scmp.eq.s32.totalorder %s22, 1
      %p82 = por %p80, %p81
      %p83 = scmp.ne.s32.totalorder %s74, %s75
      %p84 = scmp.eq.s32.totalorder %s22, 0
      %p85 = por %p83, %p84
      %p86 = scmp.ne.s32.totalorder %s74, %s75
      %p87 = scmp.eq.s32.totalorder %s23, 1
      %p88 = por %p86, %p87
      %p90 = scmp.ne.s32.totalorder %s75, %s89
      %p91 = scmp.eq.s32.totalorder %s23, 0
      %p92 = por %p90, %p91
      %s94 = sadd.s32 %s93, 1
      %p97 = scmp.eq.s32.totalorder %s17, 1
      %p98 = scmp.ne.s32.totalorder %s93, %s95
      %p99 = scmp.eq.s32.totalorder %s17, 0
      %p100 = por %p98, %p99
      %p101 = scmp.ne.s32.totalorder %s93, %s95
      %p102 = scmp.eq.s32.totalorder %s22, 1
      %p103 = por %p101, %p102
      %p104 = scmp.ne.s32.totalorder %s95, %s96
      %p105 = scmp.eq.s32.totalorder %s22, 0
      %p106 = por %p104, %p105
      %p107 = scmp.ne.s32.totalorder %s95, %s96
      %p108 = scmp.eq.s32.totalorder %s23, 1
      %p109 = por %p107, %p108
      %p111 = scmp.ne.s32.totalorder %s96, %s110
      %p112 = scmp.eq.s32.totalorder %s23, 0
      %p113 = por %p111, %p112
      %s115 = sadd.s32 %s114, 1
      %p118 = scmp.eq.s32.totalorder %s17, 1
      %p119 = scmp.ne.s32.totalorder %s114, %s116
      %p120 = scmp.eq.s32.totalorder %s17, 0
      %p121 = por %p119, %p120
      %p122 = scmp.ne.s32.totalorder %s114, %s116
      %p123 = scmp.eq.s32.totalorder %s22, 1
      %p124 = por %p122, %p123
      %p125 = scmp.ne.s32.totalorder %s116, %s117
      %p126 = scmp.eq.s32.totalorder %s22, 0
      %p127 = por %p125, %p126
      %p128 = scmp.ne.s32.totalorder %s116, %s117
      %p129 = scmp.eq.s32.totalorder %s23, 1
      %p130 = por %p128, %p129
      %p132 = scmp.ne.s32.totalorder %s117, %s131
      %p133 = scmp.eq.s32.totalorder %s23, 0
      %p134 = por %p132, %p133
      %s135 = ssub.s32 %s17, %s24
      %p136 = scmp.eq.s32.totalorder %s135, 0
      %s138 = sadd.s32 %s137, 1
      %s139 = scalar_select %p136, %s137, %s138
      %p142 = pneg %p136
      %p143 = scmp.eq.s32.totalorder %s17, 1
      %p144 = por %p142, %p143
      %p145 = scmp.ne.s32.totalorder %s137, %s140
      %p146 = scmp.eq.s32.totalorder %s17, 0
      %p147 = por %p145, %p146
      %p148 = scmp.ne.s32.totalorder %s137, %s140
      %p149 = scmp.eq.s32.totalorder %s22, 1
      %p150 = por %p148, %p149
      %p151 = scmp.ne.s32.totalorder %s140, %s141
      %p152 = scmp.eq.s32.totalorder %s22, 0
      %p153 = por %p151, %p152
      %p154 = scmp.ne.s32.totalorder %s140, %s141
      %p155 = scmp.eq.s32.totalorder %s23, 1
      %p156 = por %p154, %p155
      %p158 = scmp.ne.s32.totalorder %s141, %s157
      %p159 = scmp.eq.s32.totalorder %s23, 0
      %p160 = por %p158, %p159
      %s162 = sadd.s32 %s161, 1
      %p165 = scmp.eq.s32.totalorder %s17, 1
      %p166 = scmp.ne.s32.totalorder %s161, %s163
      %p167 = scmp.eq.s32.totalorder %s17, 0
      %p168 = por %p166, %p167
      %p169 = scmp.ne.s32.totalorder %s161, %s163
      %p170 = scmp.eq.s32.totalorder %s22, 1
      %p171 = por %p169, %p170
      %p172 = scmp.ne.s32.totalorder %s163, %s164
      %p173 = scmp.eq.s32.totalorder %s22, 0
      %p174 = por %p172, %p173
      %p175 = scmp.ne.s32.totalorder %s163, %s164
      %p176 = scmp.eq.s32.totalorder %s23, 1
      %p177 = por %p175, %p176
      %p179 = scmp.ne.s32.totalorder %s164, %s178
      %p180 = scmp.eq.s32.totalorder %s23, 0
      %p181 = por %p179, %p180
      %s183 = sadd.s32 %s182, 1
      %p186 = scmp.eq.s32.totalorder %s17, 1
      %p187 = scmp.ne.s32.totalorder %s182, %s184
      %p188 = scmp.eq.s32.totalorder %s17, 0
      %p189 = por %p187, %p188
      %p190 = scmp.ne.s32.totalorder %s182, %s184
      %p191 = scmp.eq.s32.totalorder %s22, 1
      %p192 = por %p190, %p191
      %p193 = scmp.ne.s32.totalorder %s184, %s185
      %p194 = scmp.eq.s32.totalorder %s22, 0
      %p195 = por %p193, %p194
      %p196 = scmp.ne.s32.totalorder %s184, %s185
      %p197 = scmp.eq.s32.totalorder %s23, 1
      %p198 = por %p196, %p197
      %p200 = scmp.ne.s32.totalorder %s185, %s199
      %p201 = scmp.eq.s32.totalorder %s23, 0
      %p202 = por %p200, %p201
      %p203 = scmp.le.s32.totalorder 1, %s17
      %p204 = scmp.lt.s32.totalorder %s17, 3
      %p205 = pnand %p203, %p204
      %p206 = pneg %p205
      // Predicated region
      $region9: #{tpu_custom_call.1} parent=5 // pred_check
        _
      $region10: #{tpu_custom_call.1} parent=5 // pred_check_branch
        %208 = sbr.rel (%p205) target = $region12
      $region11: #{tpu_custom_call.1} parent=5 // pred_region
        %s209 = ssub.s32 %s17, 1
        // Predicated region
        $region13: #{tpu_custom_call.1} parent=11 // pred_check
          %p210 = pneg %p64
        $region14: #{tpu_custom_call.1} parent=11 // pred_check_branch
          %212 = sbr.rel (%p210) target = $region16
        $region15: #{tpu_custom_call.1} parent=11 // pred_region
          _
        $region16: #{tpu_custom_call.1} parent=11 // pred_fallthru
          _
        // Predicated region
        $region17: #{tpu_custom_call.1} parent=11 // pred_check
          %p213 = pneg %p85
        $region18: #{tpu_custom_call.1} parent=11 // pred_check_branch
          %215 = sbr.rel (%p213) target = $region20
        $region19: #{tpu_custom_call.1} parent=11 // pred_region
          _
        $region20: #{tpu_custom_call.1} parent=11 // pred_fallthru
          _
        // Predicated region
        $region21: #{tpu_custom_call.1} parent=11 // pred_check
          %p216 = pneg %p106
        $region22: #{tpu_custom_call.1} parent=11 // pred_check_branch
          %218 = sbr.rel (%p216) target = $region24
        $region23: #{tpu_custom_call.1} parent=11 // pred_region
          _
        $region24: #{tpu_custom_call.1} parent=11 // pred_fallthru
          _
        // Predicated region
        $region25: #{tpu_custom_call.1} parent=11 // pred_check
          %p219 = pneg %p127
        $region26: #{tpu_custom_call.1} parent=11 // pred_check_branch
          %221 = sbr.rel (%p219) target = $region28
        $region27: #{tpu_custom_call.1} parent=11 // pred_region
          _
        $region28: #{tpu_custom_call.1} parent=11 // pred_fallthru
          _
      $region12: #{tpu_custom_call.1} parent=5 // pred_fallthru
        _
      %p222 = scmp.lt.s32.totalorder %s17, 2
      // Predicated region
      $region29: #{tpu_custom_call.1} parent=5 // pred_check
        %p223 = pneg %p222
      $region30: #{tpu_custom_call.1} parent=5 // pred_check_branch
        %225 = sbr.rel (%p223) target = $region32
      $region31: #{tpu_custom_call.1} parent=5 // pred_region
        // Predicated region
        $region33: #{tpu_custom_call.1} parent=31 // pred_check
          %p226 = pneg %p37
        $region34: #{tpu_custom_call.1} parent=31 // pred_check_branch
          %228 = sbr.rel (%p226) target = $region36
        $region35: #{tpu_custom_call.1} parent=31 // pred_region
          %s229 = sand.u32 %s27, 1
          %s230 = sand.u32 %s27, 1
          %s231 = smul.addr %s230, 32
          %s232 = scalar_lea.vmem [#allocation2], %s231
          %s233 = smul.addr %s17, 8
          %s234 = scalar_lea.vmem %s0, %s233
          // Predicated region
          $region37: #{tpu_custom_call.1} parent=35 // pred_check
            _
          $region38: #{tpu_custom_call.1} parent=35 // pred_check_branch
            %236 = sbr.rel (0) target = $region40
          $region39: #{tpu_custom_call.1} parent=35 // pred_region
            // Predicated region
            $region41: #{tpu_custom_call.1} parent=39 // pred_check
              _
            $region42: #{tpu_custom_call.1} parent=39 // pred_check_branch
              %238 = sbr.rel (0) target = $region44
            $region43: #{tpu_custom_call.1} parent=39 // pred_region
              // Predicated region
              $region56: #{tpu_custom_call.1} parent=43 // pred_check
                _
              $region57: #{tpu_custom_call.1} parent=43 // pred_check_branch
                %260 = sbr.rel (0) target = $region59
              $region58: #{tpu_custom_call.1} parent=43 // pred_region
                loop: start=0, step=1, limit=1
                $region60: #{tpu_custom_call.1} parent=58 // loop_pre_header
                  _
                $region61: #{tpu_custom_call.1} parent=58 // loop_header
                  %s262 = sphi 0, %s266
                  %p263 = scmp.ge.s32.totalorder %s262, 1
                  %s267 = sphi %s234, %s234
                  %s268 = sphi %s232, %s232
                $region62: #{tpu_custom_call.1} parent=58 // loop_header_branch
                  %265 = sbr.rel (%p263) target = $region66
                $region63: #{tpu_custom_call.1} parent=58 // loop_body
                  %v269 = vld [vmem:[%s267] sm:$0xff]
                  %270 = vst [vmem:[%s268] sm:$0xff] %v269
                  %v271 = vld [vmem:[%s267 + $0x10] sm:$0xff]
                  %272 = vst [vmem:[%s268 + $0x8] sm:$0xff] %v271
                  %v273 = vld [vmem:[%s267 + $0x20] sm:$0xff]
                  %274 = vst [vmem:[%s268 + $0x10] sm:$0xff] %v273
                  %v275 = vld [vmem:[%s267 + $0x30] sm:$0xff]
                  %276 = vst [vmem:[%s268 + $0x18] sm:$0xff] %v275
                $region64: #{tpu_custom_call.1} parent=58 // loop_footer
                  %s266 = sadd.s32 1, %s262
                $region65: #{tpu_custom_call.1} parent=58 // loop_footer_branch
                  %261 = sbr.rel target = $region61
                $region66: #{tpu_custom_call.1} parent=58 // loop_exit
                  _
              $region59: #{tpu_custom_call.1} parent=43 // pred_fallthru
                _
              // Predicated region
              $region67: #{tpu_custom_call.1} parent=43 // pred_check
                _
              $region68: #{tpu_custom_call.1} parent=43 // pred_check_branch
                %278 = sbr.rel target = $region70
              $region69: #{tpu_custom_call.1} parent=43 // pred_region
                _
              $region70: #{tpu_custom_call.1} parent=43 // pred_fallthru
                _
            $region44: #{tpu_custom_call.1} parent=39 // pred_fallthru
              _
            // Predicated region
            $region45: #{tpu_custom_call.1} parent=39 // pred_check
              _
            $region46: #{tpu_custom_call.1} parent=39 // pred_check_branch
              %240 = sbr.rel target = $region48
            $region47: #{tpu_custom_call.1} parent=39 // pred_region
              %s242 = ssub.s32 256, 1
              loop: start=0, step=1, limit=1
              $region49: #{tpu_custom_call.1} parent=47 // loop_pre_header
                _
              $region50: #{tpu_custom_call.1} parent=47 // loop_header
                %s244 = sphi 0, %s248
                %p245 = scmp.ge.s32.totalorder %s244, 1
                %s249 = sphi %s234, %s234
                %s250 = sphi %s232, %s232
              $region51: #{tpu_custom_call.1} parent=47 // loop_header_branch
                %247 = sbr.rel (%p245) target = $region55
              $region52: #{tpu_custom_call.1} parent=47 // loop_body
                %v251 = vld [vmem:[%s249] sm:%s242]
                %252 = vst [vmem:[%s250] sm:%s242] %v251
                %v253 = vld [vmem:[%s249 + $0x10] sm:%s242]
                %254 = vst [vmem:[%s250 + $0x8] sm:%s242] %v253
                %v255 = vld [vmem:[%s249 + $0x20] sm:%s242]
                %256 = vst [vmem:[%s250 + $0x10] sm:%s242] %v255
                %v257 = vld [vmem:[%s249 + $0x30] sm:%s242]
                %258 = vst [vmem:[%s250 + $0x18] sm:%s242] %v257
              $region53: #{tpu_custom_call.1} parent=47 // loop_footer
                %s248 = sadd.s32 1, %s244
              $region54: #{tpu_custom_call.1} parent=47 // loop_footer_branch
                %243 = sbr.rel target = $region50
              $region55: #{tpu_custom_call.1} parent=47 // loop_exit
                _
            $region48: #{tpu_custom_call.1} parent=39 // pred_fallthru
              _
          $region40: #{tpu_custom_call.1} parent=35 // pred_fallthru
            _
          %279 = vnop
        $region36: #{tpu_custom_call.1} parent=31 // pred_fallthru
          _
      $region32: #{tpu_custom_call.1} parent=5 // pred_fallthru
        _
      %p280 = scmp.le.s32.totalorder 1, %s17
      %p281 = scmp.lt.s32.totalorder %s17, 3
      %p282 = pnand %p280, %p281
      %p283 = pneg %p282
      // Predicated region
      $region71: #{tpu_custom_call.1} parent=5 // pred_check
        _
      $region72: #{tpu_custom_call.1} parent=5 // pred_check_branch
        %285 = sbr.rel (%p282) target = $region74
      $region73: #{tpu_custom_call.1} parent=5 // pred_region
        %s286 = ssub.s32 %s17, 1
        %s287 = sand.u32 %s30, 1
        %s288 = sand.u32 %s30, 1
        %s289 = smul.addr %s288, 32
        %s290 = scalar_lea.vmem [#allocation2], %s289
        // Predicated region
        $region75: #{tpu_custom_call.1} parent=73 // pred_check
          %p291 = pneg %p43
        $region76: #{tpu_custom_call.1} parent=73 // pred_check_branch
          %293 = sbr.rel (%p291) target = $region78
        $region77: #{tpu_custom_call.1} parent=73 // pred_region
          _
        $region78: #{tpu_custom_call.1} parent=73 // pred_fallthru
          _
        %s294 = sand.u32 %s30, 1
        %s295 = sand.u32 %s30, 1
        %s296 = smul.addr %s295, 32
        %s297 = scalar_lea.vmem [#allocation2], %s296
        %p298 = pneg %p43
        %p299 = pneg %p40
        %p300 = pneg %p64
        %p301 = pneg %p61
        %p302 = pneg %p85
        %p303 = pneg %p82
        %p304 = pneg %p106
        %p305 = pneg %p103
        %p306 = pneg %p127
        %p307 = pneg %p124
        %p308 = pneg %p153
        %p309 = pneg %p150
        %s310 = sand.u32 %s140, 1
        %s311 = scalar_lea.sflag [#allocation4], %s310
        %s312 = sand.u32 %s140, 1
        %s313 = smul.addr %s312, 32
        %s314 = scalar_lea.vmem [#allocation3], %s313
        %p315 = pneg %p174
        %p316 = pneg %p171
        %p317 = pneg %p195
        %p318 = pneg %p192
        %v319 = vld [vmem:[%s1] sm:$0xff]
        %v320 = vld [vmem:[%s1 + $0x8] sm:$0xff]
        %v321 = vld [vmem:[%s1 + $0x10] sm:$0xff]
        %v322 = vld [vmem:[%s1 + $0x18] sm:$0xff]
        %v323 = vld [vmem:[%s290] sm:$0xff]
        %v324 = vld [vmem:[%s290 + $0x8] sm:$0xff]
        %v325 = vld [vmem:[%s290 + $0x10] sm:$0xff]
        %v326 = vld [vmem:[%s290 + $0x18] sm:$0xff]
        %v327 = vld [vmem:[%s2] sm:$0xff]
        %v328 = vld [vmem:[%s2 + $0x8] sm:$0xff]
        %v329 = vld [vmem:[%s2 + $0x10] sm:$0xff]
        %v330 = vld [vmem:[%s2 + $0x18] sm:$0xff]
        %332 = vset.pattern.permute.xlu0 0
        %333 = vperm.xlu0 %332, %v327
        %v334 = vpop.permute.xlu0 %333
        %337 = vset.pattern.permute.xlu0 0
        %338 = vperm.xlu0 %337, %v328
        %v339 = vpop.permute.xlu0 %338
        %342 = vset.pattern.permute.xlu0 0
        %343 = vperm.xlu0 %342, %v329
        %v344 = vpop.permute.xlu0 %343
        %347 = vset.pattern.permute.xlu0 0
        %348 = vperm.xlu0 %347, %v330
        %v349 = vpop.permute.xlu0 %348
        %vm351 = vcmask 261120
        %v353 = vsel %vm351, %v319, 0
        %v356 = vsel %vm351, %v320, 0
        %v359 = vsel %vm351, %v321, 0
        %v362 = vsel %vm351, %v322, 0
        %364 = vmatprep.subr.mxu0 0.0
        %365 = vmatpush1.msra.mxu0 0.0
        %366 = vmatprep.subr.mxu0 0.0
        %367 = vmatpush1.msra.mxu0 0.0
        %368 = vmatprep.subr.mxu0 0.0
        %369 = vmatpush1.msra.mxu0 0.0
        %370 = vmatprep.subr.mxu0 0.0
        %371 = vmatpush1.msra.mxu0 0.0
        %372 = vmatprep.subr.mxu0 0.0
        %373 = vmatpush1.msra.mxu0 0.0
        %374 = vmatprep.subr.mxu0 0.0
        %375 = vmatpush1.msra.mxu0 0.0
        %376 = vmatprep.subr.mxu0 0.0
        %377 = vmatpush1.msra.mxu0 0.0
        %378 = vmatprep.subr.mxu0 0.0
        %379 = vmatpush1.msra.mxu0 0.0
        %380 = vmatprep.subr.mxu0 0.0
        %381 = vmatpush1.msra.mxu0 0.0
        %382 = vmatprep.subr.mxu0 0.0
        %383 = vmatpush1.msra.mxu0 0.0
        %384 = vmatprep.subr.mxu0 0.0
        %385 = vmatpush1.msra.mxu0 0.0
        %386 = vmatprep.subr.mxu0 0.0
        %387 = vmatpush1.msra.mxu0 0.0
        %388 = vmatprep.subr.mxu0 0.0
        %389 = vmatpush1.msra.mxu0 %v326
        %390 = vmatprep.subr.mxu0 0.0
        %391 = vmatpush1.msra.mxu0 %v325
        %392 = vmatprep.subr.mxu0 0.0
        %393 = vmatpush1.msra.mxu0 %v324
        %394 = vmatprep.subr.mxu0 0.0
        %395 = vmatpush1.msra.mxu0 %v323
        %396 = vmatprep.subr.mxu0 0.0
        %397 = vmatpush2.msra.mxu0 0.0
        %398 = vmatprep.subr.mxu0 0.0
        %399 = vmatpush2.msra.mxu0 0.0
        %400 = vmatprep.subr.mxu0 0.0
        %401 = vmatpush2.msra.mxu0 0.0
        %402 = vmatprep.subr.mxu0 0.0
        %403 = vmatpush2.msra.mxu0 0.0
        %404 = vmatprep.subr.mxu0 0.0
        %405 = vmatpush2.msra.mxu0 0.0
        %406 = vmatprep.subr.mxu0 0.0
        %407 = vmatpush2.msra.mxu0 0.0
        %408 = vmatprep.subr.mxu0 0.0
        %409 = vmatpush2.msra.mxu0 0.0
        %410 = vmatprep.subr.mxu0 0.0
        %411 = vmatpush2.msra.mxu0 0.0
        %412 = vmatprep.subr.mxu0 0.0
        %413 = vmatpush2.msra.mxu0 0.0
        %414 = vmatprep.subr.mxu0 0.0
        %415 = vmatpush2.msra.mxu0 0.0
        %416 = vmatprep.subr.mxu0 0.0
        %417 = vmatpush2.msra.mxu0 0.0
        %418 = vmatprep.subr.mxu0 0.0
        %419 = vmatpush2.msra.mxu0 0.0
        %420 = vmatprep.subr.mxu0 0.0
        %421 = vmatpush2.msra.mxu0 0.0
        %422 = vmatprep.subr.mxu0 0.0
        %423 = vmatpush2.msra.mxu0 0.0
        %424 = vmatprep.subr.mxu0 0.0
        %425 = vmatpush2.msra.mxu0 0.0
        %426 = vmatprep.subr.mxu0 0.0
        %427 = vmatpush2.msra.mxu0 0.0
        %428 = vmatprep.mubr.f32.mxu0 0.0
        %429 = vmatmul.mubr.f32.gmra.mxu0 %v353
        %v430 = vpop.f32.mrf.mxu0
        %v431 = vadd.f32 %v334, %v430
        %v432 = vpop.f32.mrf.mxu0
        %433 = vmatprep.mubr.f32.mxu0 0.0
        %434 = vmatmul.mubr.f32.gmra.mxu0 %v356
        %v435 = vpop.f32.mrf.mxu0
        %v436 = vadd.f32 %v339, %v435
        %v437 = vpop.f32.mrf.mxu0
        %438 = vmatprep.mubr.f32.mxu0 0.0
        %439 = vmatmul.mubr.f32.gmra.mxu0 %v359
        %v440 = vpop.f32.mrf.mxu0
        %v441 = vadd.f32 %v344, %v440
        %v442 = vpop.f32.mrf.mxu0
        %443 = vmatprep.mubr.f32.mxu0 0.0
        %444 = vmatmul.mubr.f32.gmra.mxu0 %v362
        %v445 = vpop.f32.mrf.mxu0
        %v446 = vadd.f32 %v349, %v445
        %v447 = vpop.f32.mrf.mxu0
        %448 = vdwg.mxu0
        %449 = vst [vmem:[%s314] sm:$0xff] %v431
        %450 = vst [vmem:[%s314 + $0x8] sm:$0xff] %v436
        %451 = vst [vmem:[%s314 + $0x10] sm:$0xff] %v441
        %452 = vst [vmem:[%s314 + $0x18] sm:$0xff] %v446
        %v453 = vlaneseq
        %v454 = vand.u32 %v453, 127
        %s455 = smul.u32 %s22, 128
        %v456 = vstv %s455
        %v457 = vadd.s32 %v454, %v456
        %vm458 = vcmp.lt.s32.totalorder %v457, 200
        %v459 = vsel %vm458, %v431, 0.0
        %v460 = vsel %vm458, %v436, 0.0
        %v461 = vsel %vm458, %v441, 0.0
        %v462 = vsel %vm458, %v446, 0.0
        %463 = vadd.xlane.f32.xlu0 %v459
        %v464 = vpop.xlane.xlu0 %463
        %465 = vadd.xlane.f32.xlu0 %v460
        %v466 = vpop.xlane.xlu0 %465
        %467 = vadd.xlane.f32.xlu0 %v461
        %v468 = vpop.xlane.xlu0 %467
        %469 = vadd.xlane.f32.xlu0 %v462
        %v470 = vpop.xlane.xlu0 %469
        %v471 = vmul.f32 %v459, %v459
        %v472 = vmul.f32 %v460, %v460
        %v473 = vmul.f32 %v461, %v461
        %v474 = vmul.f32 %v462, %v462
        %475 = vadd.xlane.f32.xlu0 %v471
        %v476 = vpop.xlane.xlu0 %475
        %477 = vadd.xlane.f32.xlu0 %v472
        %v478 = vpop.xlane.xlu0 %477
        %479 = vadd.xlane.f32.xlu0 %v473
        %v480 = vpop.xlane.xlu0 %479
        %481 = vadd.xlane.f32.xlu0 %v474
        %v482 = vpop.xlane.xlu0 %481
        %p483 = scmp.eq.s32.totalorder %s22, 0
        // Predicated region
        $region79: #{tpu_custom_call.1} parent=73 // pred_check
          %p484 = pneg %p483
        $region80: #{tpu_custom_call.1} parent=73 // pred_check_branch
          %486 = sbr.rel (%p484) target = $region82
        $region81: #{tpu_custom_call.1} parent=73 // pred_region
          %vm487 = vcmask 7168
          %488 = vst.msk [vmem:[%s6] sm:$0xff] %vm487, 0.0
          %489 = vst.msk [vmem:[%s6 + $0x8] sm:$0xff] %vm487, 0.0
          %490 = vst.msk [vmem:[%s6 + $0x10] sm:$0xff] %vm487, 0.0
          %491 = vst.msk [vmem:[%s6 + $0x18] sm:$0xff] %vm487, 0.0
          %492 = vst.msk [vmem:[%s7] sm:$0xff] %vm487, 0.0
          %493 = vst.msk [vmem:[%s7 + $0x8] sm:$0xff] %vm487, 0.0
          %494 = vst.msk [vmem:[%s7 + $0x10] sm:$0xff] %vm487, 0.0
          %495 = vst.msk [vmem:[%s7 + $0x18] sm:$0xff] %vm487, 0.0
        $region82: #{tpu_custom_call.1} parent=73 // pred_fallthru
          _
        %v496 = vld [vmem:[%s6] sm:$0xff]
        %v497 = vld [vmem:[%s6 + $0x8] sm:$0xff]
        %v498 = vld [vmem:[%s6 + $0x10] sm:$0xff]
        %v499 = vld [vmem:[%s6 + $0x18] sm:$0xff]
        %v500 = vadd.f32 %v496, %v464
        %v501 = vadd.f32 %v497, %v466
        %v502 = vadd.f32 %v498, %v468
        %v503 = vadd.f32 %v499, %v470
        %vm504 = vcmask 7168
        %505 = vst.msk [vmem:[%s6] sm:$0xff] %vm504, %v500
        %506 = vst.msk [vmem:[%s6 + $0x8] sm:$0xff] %vm504, %v501
        %507 = vst.msk [vmem:[%s6 + $0x10] sm:$0xff] %vm504, %v502
        %508 = vst.msk [vmem:[%s6 + $0x18] sm:$0xff] %vm504, %v503
        %v509 = vld [vmem:[%s7] sm:$0xff]
        %v510 = vld [vmem:[%s7 + $0x8] sm:$0xff]
        %v511 = vld [vmem:[%s7 + $0x10] sm:$0xff]
        %v512 = vld [vmem:[%s7 + $0x18] sm:$0xff]
        %v513 = vadd.f32 %v509, %v476
        %v514 = vadd.f32 %v510, %v478
        %v515 = vadd.f32 %v511, %v480
        %v516 = vadd.f32 %v512, %v482
        %517 = vst.msk [vmem:[%s7] sm:$0xff] %vm504, %v513
        %518 = vst.msk [vmem:[%s7 + $0x8] sm:$0xff] %vm504, %v514
        %519 = vst.msk [vmem:[%s7 + $0x10] sm:$0xff] %vm504, %v515
        %520 = vst.msk [vmem:[%s7 + $0x18] sm:$0xff] %vm504, %v516
        %p521 = scmp.eq.s32.totalorder %s22, 1
        // Predicated region
        $region83: #{tpu_custom_call.1} parent=73 // pred_check
          %p522 = pneg %p521
        $region84: #{tpu_custom_call.1} parent=73 // pred_check_branch
          %524 = sbr.rel (%p522) target = $region86
        $region85: #{tpu_custom_call.1} parent=73 // pred_region
          %v525 = vld [vmem:[%s6] sm:$0xff]
          %v526 = vld [vmem:[%s6 + $0x8] sm:$0xff]
          %v527 = vld [vmem:[%s6 + $0x10] sm:$0xff]
          %v528 = vld [vmem:[%s6 + $0x18] sm:$0xff]
          %v529 = vmul.f32 %v525, 0.005
          %v530 = vmul.f32 %v526, 0.005
          %v531 = vmul.f32 %v527, 0.005
          %v532 = vmul.f32 %v528, 0.005
          %v533 = vld [vmem:[%s7] sm:$0xff]
          %v534 = vld [vmem:[%s7 + $0x8] sm:$0xff]
          %v535 = vld [vmem:[%s7 + $0x10] sm:$0xff]
          %v536 = vld [vmem:[%s7 + $0x18] sm:$0xff]
          %v537 = vmul.f32 %v533, 0.005
          %v538 = vmul.f32 %v534, 0.005
          %v539 = vmul.f32 %v535, 0.005
          %v540 = vmul.f32 %v536, 0.005
          %v541 = vmul.f32 %v529, %v529
          %v542 = vmul.f32 %v530, %v530
          %v543 = vmul.f32 %v531, %v531
          %v544 = vmul.f32 %v532, %v532
          %v545 = vsub.f32 %v537, %v541
          %v546 = vsub.f32 %v538, %v542
          %v547 = vsub.f32 %v539, %v543
          %v548 = vsub.f32 %v540, %v544
          %v549 = vld [vmem:[%s3] sm:$0xff]
          %v550 = vld [vmem:[%s3 + $0x8] sm:$0xff]
          %v551 = vld [vmem:[%s3 + $0x10] sm:$0xff]
          %v552 = vld [vmem:[%s3 + $0x18] sm:$0xff]
          %v553 = vadd.f32 %v545, 1e-05
          %v554 = vadd.f32 %v546, 1e-05
          %v555 = vadd.f32 %v547, 1e-05
          %v556 = vadd.f32 %v548, 1e-05
          %v557 = vrsqrt.pop %v553
          %v558 = vrsqrt.pop %v554
          %v559 = vrsqrt.pop %v555
          %v560 = vrsqrt.pop %v556
          %v561 = vmul.f32 %v549, %v557
          %v562 = vmul.f32 %v550, %v558
          %v563 = vmul.f32 %v551, %v559
          %v564 = vmul.f32 %v552, %v560
          %565 = vst.msk [vmem:[%s6] sm:$0xff] %vm504, %v561
          %566 = vst.msk [vmem:[%s6 + $0x8] sm:$0xff] %vm504, %v562
          %567 = vst.msk [vmem:[%s6 + $0x10] sm:$0xff] %vm504, %v563
          %568 = vst.msk [vmem:[%s6 + $0x18] sm:$0xff] %vm504, %v564
          %v569 = vld [vmem:[%s4] sm:$0xff]
          %v570 = vld [vmem:[%s4 + $0x8] sm:$0xff]
          %v571 = vld [vmem:[%s4 + $0x10] sm:$0xff]
          %v572 = vld [vmem:[%s4 + $0x18] sm:$0xff]
          %v573 = vmul.f32 %v529, %v561
          %v574 = vmul.f32 %v530, %v562
          %v575 = vmul.f32 %v531, %v563
          %v576 = vmul.f32 %v532, %v564
          %v577 = vsub.f32 %v569, %v573
          %v578 = vsub.f32 %v570, %v574
          %v579 = vsub.f32 %v571, %v575
          %v580 = vsub.f32 %v572, %v576
          %581 = vst.msk [vmem:[%s7] sm:$0xff] %vm504, %v577
          %582 = vst.msk [vmem:[%s7 + $0x8] sm:$0xff] %vm504, %v578
          %583 = vst.msk [vmem:[%s7 + $0x10] sm:$0xff] %vm504, %v579
          %584 = vst.msk [vmem:[%s7 + $0x18] sm:$0xff] %vm504, %v580
        $region86: #{tpu_custom_call.1} parent=73 // pred_fallthru
          _
        %s585 = sand.u32 %s140, 1
        %s586 = scalar_lea.sflag [#allocation4], %s585
        %s587 = sand.u32 %s140, 1
        %s588 = smul.addr %s587, 32
        %s589 = scalar_lea.vmem [#allocation3], %s588
        // Predicated region
        $region87: #{tpu_custom_call.1} parent=73 // pred_check
          %p590 = pneg %p150
        $region88: #{tpu_custom_call.1} parent=73 // pred_check_branch
          %592 = sbr.rel (%p590) target = $region90
        $region89: #{tpu_custom_call.1} parent=73 // pred_region
          %s594 = ssub.s32 512, 512
          %595 = vsyncadd %s586, %s594
          %s596 = smul.addr %s22, 128
          %s597 = scalar_lea.hbm %s5, %s596
          %s598 = sshll.u32 %s589, 4
          %s599 = int_to_ptr.vmem [resolvable:$true] %s598
          %604 = dma.vmem_to_hbm [thread:$0]  %s599, 512, %s597, %s586, 128, 256, 8
        $region90: #{tpu_custom_call.1} parent=73 // pred_fallthru
          _
        // Predicated region
        $region91: #{tpu_custom_call.1} parent=73 // pred_check
          %p605 = pneg %p171
        $region92: #{tpu_custom_call.1} parent=73 // pred_check_branch
          %607 = sbr.rel (%p605) target = $region94
        $region93: #{tpu_custom_call.1} parent=73 // pred_region
          _
        $region94: #{tpu_custom_call.1} parent=73 // pred_fallthru
          _
        // Predicated region
        $region95: #{tpu_custom_call.1} parent=73 // pred_check
          %p608 = pneg %p192
        $region96: #{tpu_custom_call.1} parent=73 // pred_check_branch
          %610 = sbr.rel (%p608) target = $region98
        $region97: #{tpu_custom_call.1} parent=73 // pred_region
          _
        $region98: #{tpu_custom_call.1} parent=73 // pred_fallthru
          _
        // Predicated region
        $region99: #{tpu_custom_call.1} parent=73 // pred_check
          %p611 = pneg %p171
        $region100: #{tpu_custom_call.1} parent=73 // pred_check_branch
          %613 = sbr.rel (%p611) target = $region102
        $region101: #{tpu_custom_call.1} parent=73 // pred_region
          _
        $region102: #{tpu_custom_call.1} parent=73 // pred_fallthru
          _
        // Predicated region
        $region103: #{tpu_custom_call.1} parent=73 // pred_check
          %p614 = pneg %p192
        $region104: #{tpu_custom_call.1} parent=73 // pred_check_branch
          %616 = sbr.rel (%p614) target = $region106
        $region105: #{tpu_custom_call.1} parent=73 // pred_region
          _
        $region106: #{tpu_custom_call.1} parent=73 // pred_fallthru
          _
      $region74: #{tpu_custom_call.1} parent=5 // pred_fallthru
        _
      %p617 = scmp.le.s32.totalorder 2, %s17
      // Predicated region
      $region107: #{tpu_custom_call.1} parent=5 // pred_check
        %p618 = pneg %p617
      $region108: #{tpu_custom_call.1} parent=5 // pred_check_branch
        %620 = sbr.rel (%p618) target = $region110
      $region109: #{tpu_custom_call.1} parent=5 // pred_region
        %s621 = ssub.s32 %s17, 2
        // Predicated region
        $region111: #{tpu_custom_call.1} parent=109 // pred_check
          %p622 = pneg %p156
        $region112: #{tpu_custom_call.1} parent=109 // pred_check_branch
          %624 = sbr.rel (%p622) target = $region114
        $region113: #{tpu_custom_call.1} parent=109 // pred_region
          %s625 = sand.u32 %s141, 1
          %s626 = scalar_lea.sflag [#allocation4], %s625
          %s627 = sand.u32 %s141, 1
          %s628 = smul.addr %s627, 32
          %s629 = scalar_lea.vmem [#allocation3], %s628
          %630 = dma.done %s626, 512
        $region114: #{tpu_custom_call.1} parent=109 // pred_fallthru
          _
      $region110: #{tpu_custom_call.1} parent=5 // pred_fallthru
        _
    $region6: #{tpu_custom_call.1} parent=1 // loop_footer
      %s21 = sadd.s32 1, %s17
    $region7: #{tpu_custom_call.1} parent=1 // loop_footer_branch
      %16 = sbr.rel target = $region3
    $region8: #{tpu_custom_call.1} parent=1 // loop_exit
      _
    %631 = vsyncpa [#allocation4], 1
    %s632 = scalar_lea.sflag [#allocation4], 1
    %633 = vsyncpa %s632, 1

</llo_original>
